<compile_context>
chip_gen: v7x
topology: tpu7x:2x2x1
jax: 0.10.0
libtpu: 0.0.40
codegen_flags: <defaults>
</compile_context>

<pallas_src>
import functools

import jax
import jax.numpy as jnp
from jax import lax
from jax.experimental import pallas as pl
from jax.experimental.pallas import tpu as pltpu


# -----------------------------------------------------------------------------
# Pallas kernel: fused (W @ patches^T) + bias + ReLU, lane-dense output
# -----------------------------------------------------------------------------
def _conv_kernel(w_ref, b_ref, p_ref, o_ref):
    # w_ref: (COUT, K)    bf16, resident across the grid
    # b_ref: (COUT, 1)    f32
    # p_ref: (K, H*W)     bf16, one batch element's transposed im2col patches
    # o_ref: (COUT, H*W)  f32, lane-dense (H*W is a multiple of 128 here)
    acc = jnp.dot(w_ref[...], p_ref[...], preferred_element_type=jnp.float32)
    acc = acc + b_ref[...]
    o_ref[...] = jnp.maximum(acc, 0.0).astype(o_ref.dtype)


def _conv_matmul_t(patches_t, w_mat, bias2d):
    """patches_t: (N, K, HW) bf16, w_mat: (COUT, K) bf16, bias2d: (COUT, 1) f32.

    Returns (N, COUT, HW) f32 = relu(W @ patches_t[n] + b) per batch element.
    """
    n, k, hw = patches_t.shape
    cout = w_mat.shape[0]
    return pl.pallas_call(
        _conv_kernel,
        out_shape=jax.ShapeDtypeStruct((n, cout, hw), jnp.float32),
        grid_spec=pltpu.PrefetchScalarGridSpec(
            num_scalar_prefetch=0,
            grid=(n,),
            in_specs=[
                pl.BlockSpec((cout, k), lambda i: (0, 0)),      # weights (tiny, resident)
                pl.BlockSpec((cout, 1), lambda i: (0, 0)),      # bias column
                pl.BlockSpec((None, k, hw), lambda i: (i, 0, 0)),  # per-sample patches
            ],
            out_specs=pl.BlockSpec((None, cout, hw), lambda i: (i, 0, 0)),
        ),
        # Batch axis is independent -> "parallel" so v7x megacore shards it.
        # Tiles are tiny (~20 KiB), so the default scoped VMEM limit is fine on
        # all of v5e/v6e/v7x; raise vmem_limit_bytes only for much larger H*W.
        compiler_params=pltpu.CompilerParams(
            dimension_semantics=("parallel",),
        ),
    )(w_mat, bias2d, patches_t)


# -----------------------------------------------------------------------------
# Glue: transposed im2col (K on sublanes, H*W on lanes) + parameter handling
# -----------------------------------------------------------------------------
def _im2col_t(x, kh, kw, pad):
    """x: (N, C, H, W) f32 -> (N, C*kh*kw, H*W) bf16, stride-1 'same' patches.

    Patch-channel ordering is (C, KH, KW), matching torch Conv2d weight
    (Cout, Cin, KH, KW) flattened to (Cout, Cin*KH*KW).
    """
    n, c, h, w = x.shape
    xp = jnp.pad(x.astype(jnp.bfloat16),
                 ((0, 0), (0, 0), (pad, pad), (pad, pad)))
    cols = [xp[:, :, i:i + h, j:j + w] for i in range(kh) for j in range(kw)]
    stk = jnp.stack(cols, axis=2)                  # (N, C, KH*KW, H, W)
    return stk.reshape(n, c * kh * kw, h * w)      # (N, K, H*W)


@functools.partial(jax.jit, static_argnames=("kh", "kw", "pad", "cout"))
def _dist_conv_forward(x, w_mat, bias2d, *, kh, kw, pad, cout):
    n, _, h, w = x.shape
    patches_t = _im2col_t(x, kh, kw, pad)          # (N, K, H*W) bf16
    out_flat = _conv_matmul_t(patches_t, w_mat, bias2d)   # (N, COUT, H*W) f32
    # Lane-dense kernel output reshapes straight to NCHW -- no transpose.
    return out_flat.reshape(n, cout, h, w)


def broadcast_params(params):
    """Rank-0 parameter broadcast.  Single-device: identity."""
    return params


class DistModuleConv:
    """JAX analogue of DistModule wrapping Conv2d(cin, cout, 3, pad=1)+ReLU."""

    def __init__(self, cin, cout, kh=3, kw=3, pad=1):
        self.cin, self.cout, self.kh, self.kw, self.pad = cin, cout, kh, kw, pad
        self.training = True
        kw_key, kb_key = jax.random.split(jax.random.PRNGKey(42))
        # torch Conv2d weight layout: (Cout, Cin, KH, KW)
        weight = jax.random.normal(kw_key, (cout, cin, kh, kw), jnp.float32) * 0.1
        bias = jax.random.normal(kb_key, (cout,), jnp.float32) * 0.1
        # DistModule.__init__ broadcasts parameters from rank 0.
        self.params = broadcast_params({"weight": weight, "bias": bias})
        # Hoisted, kernel-ready operands (computed once, not per forward):
        #   (Cout, Cin*KH*KW) bf16 weight matrix and (Cout, 1) f32 bias column.
        self.w_mat = self.params["weight"].reshape(cout, cin * kh * kw).astype(
            jnp.bfloat16)
        self.bias2d = self.params["bias"].reshape(cout, 1)

    def train(self, mode=True):
        # DistModule.train delegates to the wrapped module; the conv+ReLU has
        # no train/eval behavioral difference, so only the flag is tracked.
        self.training = mode
        return self

    def __call__(self, x_nchw):
        # DistModule.forward(*inputs) -> self.module(*inputs)
        return _dist_conv_forward(x_nchw, self.w_mat, self.bias2d,
                                  kh=self.kh, kw=self.kw, pad=self.pad,
                                  cout=self.cout)


# -----------------------------------------------------------------------------
# Main
# -----------------------------------------------------------------------------
if __name__ == "__main__":
    key = jax.random.PRNGKey(0)
    x = jax.random.normal(key, (2, 4, 16, 16), jnp.float32)   # NCHW, like torch

    model = DistModuleConv(cin=4, cout=8)
    out = jax.block_until_ready(model(x))
    assert out.shape == (2, 8, 16, 16)

    # Reference check: the kernel multiplies bf16-rounded inputs/weights with
    # f32 accumulation, so compare against an XLA f32 conv on the same
    # bf16-rounded operands (tight tolerance), plus a loose check vs. full f32.
    xq = x.astype(jnp.bfloat16).astype(jnp.float32)
    wq = model.params["weight"].astype(jnp.bfloat16).astype(jnp.float32)
    bias4d = model.params["bias"][None, :, None, None]

    ref_q = lax.conv_general_dilated(
        xq, wq, window_strides=(1, 1), padding="SAME",
        dimension_numbers=("NCHW", "OIHW", "NCHW"))
    ref_q = jnp.maximum(ref_q + bias4d, 0.0)
    assert float(jnp.max(jnp.abs(out - ref_q))) < 2e-3

    ref_f32 = lax.conv_general_dilated(
        x, model.params["weight"], window_strides=(1, 1), padding="SAME",
        dimension_numbers=("NCHW", "OIHW", "NCHW"))
    ref_f32 = jnp.maximum(ref_f32 + bias4d, 0.0)
    assert float(jnp.max(jnp.abs(out - ref_f32))) < 5e-2

    print("KERNEL_OK")
</pallas_src>

<mosaic_0001>
module attributes {stable_mosaic.version = 11 : i64} {
  func.func @_conv_kernel(%arg0: i32, %arg1: memref<8x36xbf16, #tpu.memory_space<vmem>>, %arg2: memref<8x1xf32, #tpu.memory_space<vmem>>, %arg3: memref<1x36x256xbf16, #tpu.memory_space<vmem>>, %arg4: memref<1x8x256xf32, #tpu.memory_space<vmem>>) attributes {dimension_semantics = [#tpu.dimension_semantics<parallel>], iteration_bounds = array<i64: 2>, scalar_prefetch = 0 : i64, scratch_operands = 0 : i64, tpu.core_type = #tpu.core_type<tc>, window_params = [{pipeline_mode = #tpu.pipeline_mode<synchronous>, transform_indices = @transform_0, window_bounds = array<i64: 8, 36>}, {pipeline_mode = #tpu.pipeline_mode<synchronous>, transform_indices = @transform_1, window_bounds = array<i64: 8, 1>}, {transform_indices = @transform_2, window_bounds = array<i64: 1, 36, 256>}, {transform_indices = @transform_3, window_bounds = array<i64: 1, 8, 256>}]} {
    %c0 = arith.constant 0 : index
    %c0_0 = arith.constant 0 : index
    %0 = vector.load %arg1[%c0, %c0_0] : memref<8x36xbf16, #tpu.memory_space<vmem>>, vector<8x36xbf16>
    %c0_1 = arith.constant 0 : index
    %c0_2 = arith.constant 0 : index
    %c0_3 = arith.constant 0 : index
    %1 = vector.load %arg3[%c0_1, %c0_2, %c0_3] : memref<1x36x256xbf16, #tpu.memory_space<vmem>>, vector<1x36x256xbf16>
    %2 = vector.shape_cast %1 : vector<1x36x256xbf16> to vector<36x256xbf16>
    %cst = arith.constant dense<0.000000e+00> : vector<8x256xf32>
    %3 = tpu.matmul %0, %2, %cst {dimension_numbers = #tpu.dot_dimension_numbers<[1], [0], [0], [1], [0, 0, 1, 1], [], []>} : vector<8x36xbf16>, vector<36x256xbf16>, vector<8x256xf32> -> vector<8x256xf32>
    %c0_4 = arith.constant 0 : index
    %c0_5 = arith.constant 0 : index
    %4 = vector.load %arg2[%c0_4, %c0_5] : memref<8x1xf32, #tpu.memory_space<vmem>>, vector<8x1xf32>
    %5 = vector.broadcast %4 : vector<8x1xf32> to vector<8x256xf32>
    %6 = arith.addf %3, %5 : vector<8x256xf32>
    %cst_6 = arith.constant 0.000000e+00 : f32
    %7 = vector.broadcast %cst_6 : f32 to vector<8x256xf32>
    %8 = arith.maximumf %6, %7 : vector<8x256xf32>
    %c0_7 = arith.constant 0 : index
    %c0_8 = arith.constant 0 : index
    %c0_9 = arith.constant 0 : index
    %9 = vector.load %arg4[%c0_7, %c0_8, %c0_9] : memref<1x8x256xf32, #tpu.memory_space<vmem>>, vector<1x8x256xf32>
    %10 = vector.shape_cast %9 : vector<1x8x256xf32> to vector<8x256xf32>
    %11 = vector.shape_cast %8 : vector<8x256xf32> to vector<1x8x256xf32>
    tpu.vector_store %arg4[%c0_7, %c0_8, %c0_9], %11 {strides = array<i32>} : memref<1x8x256xf32, #tpu.memory_space<vmem>>, vector<1x8x256xf32>,
    return
  }
  func.func @transform_0(%arg0: i32) -> (i32, i32) {
    %c0_i32 = arith.constant 0 : i32
    %c0_i32_0 = arith.constant 0 : i32
    %c0_i32_1 = arith.constant 0 : i32
    return %c0_i32, %c0_i32_0 : i32, i32
  }
  func.func @transform_1(%arg0: i32) -> (i32, i32) {
    %c0_i32 = arith.constant 0 : i32
    %c0_i32_0 = arith.constant 0 : i32
    %c0_i32_1 = arith.constant 0 : i32
    return %c0_i32, %c0_i32_0 : i32, i32
  }
  func.func @transform_2(%arg0: i32) -> (i32, i32, i32) {
    %c0_i32 = arith.constant 0 : i32
    %c0_i32_0 = arith.constant 0 : i32
    %c0_i32_1 = arith.constant 0 : i32
    return %arg0, %c0_i32, %c0_i32_0 : i32, i32, i32
  }
  func.func @transform_3(%arg0: i32) -> (i32, i32, i32) {
    %c0_i32 = arith.constant 0 : i32
    %c0_i32_0 = arith.constant 0 : i32
    %c0_i32_1 = arith.constant 0 : i32
    return %arg0, %c0_i32, %c0_i32_0 : i32, i32, i32
  }
}

</mosaic_0001>

<llo_original>
// kernel: _dist_conv_forward.1
$region0: #{_dist_conv_forward.1}
  #allocation0 [shape = 'u32[]', space=smem, size = 0x4, offset = 0x4, fixed_abs, tag = 'smem constant byte address 0x4 - core index']
  #allocation1 [shape = 'u32[144,128]{1,0:T(1,128)}', space=vmem, size = 0x12000, scoped, tag = 'internal scratch']
  %s0 = inlined_call_operand.vmem [shape: bf16[8,36], index: 0, kind: input, shape index: {}]
  %s1 = inlined_call_operand.vmem [shape: f32[8,1], index: 1, kind: input, shape index: {}]
  %s2 = inlined_call_operand.vmem [shape: bf16[2,36,256], index: 2, kind: input, shape index: {}]
  %s3 = inlined_call_operand.vmem [shape: f32[2,8,256], index: 3, kind: output, shape index: {}]
  %s4 = sld [smem:[#allocation0]]
  $region45: #{_dist_conv_forward.1} parent=0
    _
  %s6 = ssub.s32 1, %s4
  %s7 = scalar_select 0, %s6, %s4
  loop: start=0, step=1, limit=4
  $region2: #{_dist_conv_forward.1} parent=0 // loop_pre_header
    _
  $region3: #{_dist_conv_forward.1} parent=0 // loop_header
    %s9 = sphi 0, %s13
    %p10 = scmp.ge.s32.totalorder %s9, 4
    %s17 = sphi 0, %s17
    %s19 = sphi 0, %s17
    %s20 = sphi 0, %s19
    %s34 = sphi 0, %s20
    %s38 = sphi 0, %s38
    %s40 = sphi 0, %s38
    %s41 = sphi 0, %s40
    %s55 = sphi 0, %s41
    %s61 = sphi 0, %s63
    %s64 = sphi 0, %s61
    %s65 = sphi 0, %s64
    %s81 = sphi 0, %s65
    %s87 = sphi 0, %s89
    %s90 = sphi 0, %s87
    %s91 = sphi 0, %s90
    %s107 = sphi 0, %s91
  $region4: #{_dist_conv_forward.1} parent=0 // loop_header_branch
    %12 = sbr.rel (%p10) target = $region8
  $region5: #{_dist_conv_forward.1} parent=0 // loop_body
    %s14 = ssub.s32 %s9, 1
    %s15 = ssub.s32 %s9, 2
    %s16 = sadd.s32 %s9, 1
    %s18 = sadd.s32 %s17, 1
    %p21 = scmp.eq.s32.totalorder %s9, 1
    %p22 = scmp.ne.s32.totalorder %s17, %s19
    %p23 = scmp.eq.s32.totalorder %s9, 0
    %p24 = por %p22, %p23
    %p25 = scmp.ne.s32.totalorder %s17, %s19
    %p26 = scmp.eq.s32.totalorder %s14, 1
    %p27 = por %p25, %p26
    %p28 = scmp.ne.s32.totalorder %s19, %s20
    %p29 = scmp.eq.s32.totalorder %s14, 0
    %p30 = por %p28, %p29
    %p31 = scmp.ne.s32.totalorder %s19, %s20
    %p32 = scmp.eq.s32.totalorder %s15, 1
    %p33 = por %p31, %p32
    %p35 = scmp.ne.s32.totalorder %s20, %s34
    %p36 = scmp.eq.s32.totalorder %s15, 0
    %p37 = por %p35, %p36
    %s39 = sadd.s32 %s38, 1
    %p42 = scmp.eq.s32.totalorder %s9, 1
    %p43 = scmp.ne.s32.totalorder %s38, %s40
    %p44 = scmp.eq.s32.totalorder %s9, 0
    %p45 = por %p43, %p44
    %p46 = scmp.ne.s32.totalorder %s38, %s40
    %p47 = scmp.eq.s32.totalorder %s14, 1
    %p48 = por %p46, %p47
    %p49 = scmp.ne.s32.totalorder %s40, %s41
    %p50 = scmp.eq.s32.totalorder %s14, 0
    %p51 = por %p49, %p50
    %p52 = scmp.ne.s32.totalorder %s40, %s41
    %p53 = scmp.eq.s32.totalorder %s15, 1
    %p54 = por %p52, %p53
    %p56 = scmp.ne.s32.totalorder %s41, %s55
    %p57 = scmp.eq.s32.totalorder %s15, 0
    %p58 = por %p56, %p57
    %s59 = ssub.s32 %s9, %s16
    %p60 = scmp.eq.s32.totalorder %s59, 0
    %s62 = sadd.s32 %s61, 1
    %s63 = scalar_select %p60, %s61, %s62
    %p66 = pneg %p60
    %p67 = scmp.eq.s32.totalorder %s9, 1
    %p68 = por %p66, %p67
    %p69 = scmp.ne.s32.totalorder %s61, %s64
    %p70 = scmp.eq.s32.totalorder %s9, 0
    %p71 = por %p69, %p70
    %p72 = scmp.ne.s32.totalorder %s61, %s64
    %p73 = scmp.eq.s32.totalorder %s14, 1
    %p74 = por %p72, %p73
    %p75 = scmp.ne.s32.totalorder %s64, %s65
    %p76 = scmp.eq.s32.totalorder %s14, 0
    %p77 = por %p75, %p76
    %p78 = scmp.ne.s32.totalorder %s64, %s65
    %p79 = scmp.eq.s32.totalorder %s15, 1
    %p80 = por %p78, %p79
    %p82 = scmp.ne.s32.totalorder %s65, %s81
    %p83 = scmp.eq.s32.totalorder %s15, 0
    %p84 = por %p82, %p83
    %s85 = ssub.s32 %s9, %s16
    %p86 = scmp.eq.s32.totalorder %s85, 0
    %s88 = sadd.s32 %s87, 1
    %s89 = scalar_select %p86, %s87, %s88
    %p92 = pneg %p86
    %p93 = scmp.eq.s32.totalorder %s9, 1
    %p94 = por %p92, %p93
    %p95 = scmp.ne.s32.totalorder %s87, %s90
    %p96 = scmp.eq.s32.totalorder %s9, 0
    %p97 = por %p95, %p96
    %p98 = scmp.ne.s32.totalorder %s87, %s90
    %p99 = scmp.eq.s32.totalorder %s14, 1
    %p100 = por %p98, %p99
    %p101 = scmp.ne.s32.totalorder %s90, %s91
    %p102 = scmp.eq.s32.totalorder %s14, 0
    %p103 = por %p101, %p102
    %p104 = scmp.ne.s32.totalorder %s90, %s91
    %p105 = scmp.eq.s32.totalorder %s15, 1
    %p106 = por %p104, %p105
    %p108 = scmp.ne.s32.totalorder %s91, %s107
    %p109 = scmp.eq.s32.totalorder %s15, 0
    %p110 = por %p108, %p109
    %p111 = scmp.le.s32.totalorder 1, %s9
    %p112 = scmp.lt.s32.totalorder %s9, 3
    %p113 = pnand %p111, %p112
    %p114 = pneg %p113
    // Predicated region
    $region9: #{_dist_conv_forward.1} parent=5 // pred_check
      _
    $region10: #{_dist_conv_forward.1} parent=5 // pred_check_branch
      %116 = sbr.rel (%p113) target = $region12
    $region11: #{_dist_conv_forward.1} parent=5 // pred_region
      %s117 = ssub.s32 %s9, 1
      // Predicated region
      $region13: #{_dist_conv_forward.1} parent=11 // pred_check
        %p118 = pneg %p30
      $region14: #{_dist_conv_forward.1} parent=11 // pred_check_branch
        %120 = sbr.rel (%p118) target = $region16
      $region15: #{_dist_conv_forward.1} parent=11 // pred_region
        _
      $region16: #{_dist_conv_forward.1} parent=11 // pred_fallthru
        _
      // Predicated region
      $region17: #{_dist_conv_forward.1} parent=11 // pred_check
        %p121 = pneg %p51
      $region18: #{_dist_conv_forward.1} parent=11 // pred_check_branch
        %123 = sbr.rel (%p121) target = $region20
      $region19: #{_dist_conv_forward.1} parent=11 // pred_region
        _
      $region20: #{_dist_conv_forward.1} parent=11 // pred_fallthru
        _
    $region12: #{_dist_conv_forward.1} parent=5 // pred_fallthru
      _
    %p124 = scmp.lt.s32.totalorder %s9, 2
    // Predicated region
    $region21: #{_dist_conv_forward.1} parent=5 // pred_check
      %p125 = pneg %p124
    $region22: #{_dist_conv_forward.1} parent=5 // pred_check_branch
      %127 = sbr.rel (%p125) target = $region24
    $region23: #{_dist_conv_forward.1} parent=5 // pred_region
      // Predicated region
      $region25: #{_dist_conv_forward.1} parent=23 // pred_check
        %p128 = pneg %p71
      $region26: #{_dist_conv_forward.1} parent=23 // pred_check_branch
        %130 = sbr.rel (%p128) target = $region28
      $region27: #{_dist_conv_forward.1} parent=23 // pred_region
        %p131 = scmp.lt.s32.totalorder %s9, 1
        %s132 = scalar_select %p131, %s9, 1
        %s133 = smul.addr %s132, 10
        %s134 = smul.addr %s133, 4
        %s135 = scalar_lea.vmem %s2, %s134
      $region28: #{_dist_conv_forward.1} parent=23 // pred_fallthru
        _
    $region24: #{_dist_conv_forward.1} parent=5 // pred_fallthru
      _
    %p136 = scmp.le.s32.totalorder 1, %s9
    %p137 = scmp.lt.s32.totalorder %s9, 3
    %p138 = pnand %p136, %p137
    %p139 = pneg %p138
    // Predicated region
    $region29: #{_dist_conv_forward.1} parent=5 // pred_check
      _
    $region30: #{_dist_conv_forward.1} parent=5 // pred_check_branch
      %141 = sbr.rel (%p138) target = $region32
    $region31: #{_dist_conv_forward.1} parent=5 // pred_region
      %s142 = ssub.s32 %s9, 1
      %p143 = pneg %p30
      %p144 = pneg %p27
      %p145 = pneg %p51
      %p146 = pneg %p48
      %p147 = scmp.lt.s32.totalorder %s14, 1
      %s148 = scalar_select %p147, %s14, 1
      %s149 = smul.addr %s148, 10
      %s150 = smul.addr %s149, 4
      %s151 = scalar_lea.vmem %s2, %s150
      %p152 = pneg %p77
      %p153 = pneg %p74
      %p154 = pneg %p103
      %p155 = pneg %p100
      %p156 = scmp.lt.s32.totalorder %s14, 1
      %s157 = scalar_select %p156, %s14, 1
      %s158 = smul.addr %s157, 2
      %s159 = smul.addr %s158, 8
      %s160 = scalar_lea.vmem %s3, %s159
      %p161 = scmp.lt.s32.totalorder %s14, 1
      %s162 = scalar_select %p161, %s14, 1
      %s163 = smul.addr %s162, 10
      %s164 = smul.addr %s163, 4
      %s165 = scalar_lea.vmem %s2, %s164
      %p166 = scmp.lt.s32.totalorder %s14, 1
      %s167 = scalar_select %p166, %s14, 1
      %s168 = smul.addr %s167, 2
      %s169 = smul.addr %s168, 8
      %s170 = scalar_lea.vmem %s3, %s169
      %v172 = vld [vmem:[%s0] sm:$0xf]
      %v173 = vld [vmem:[%s165] sm:$0xff]
      %v174 = vld [vmem:[%s165 + $0x8] sm:$0xff]
      %v175 = vld [vmem:[%s165 + $0x10] sm:$0xff]
      %v176 = vld [vmem:[%s165 + $0x18] sm:$0xff]
      %v177 = vld [vmem:[%s165 + $0x20] sm:$0x33]
      %v178 = vld [vmem:[%s1] sm:$0xff]
      %180 = vset.pattern.permute.xlu0 0
      %181 = vperm.xlu0 %180, %v178
      %v182 = vpop.permute.xlu0 %181
      %v189 = vunpack.c.l.b16 %v173
      %v190 = vunpack.c.h.b16 %v173
      %v191 = vunpack.c.l.b16 %v174
      %v192 = vunpack.c.h.b16 %v174
      %v193 = vunpack.c.l.b16 %v175
      %v194 = vunpack.c.h.b16 %v175
      %v195 = vunpack.c.l.b16 %v176
      %v196 = vunpack.c.h.b16 %v176
      %v197 = vunpack.c.l.b16 %v177
      %v198 = vunpack.c.h.b16 %v177
      %v199 = vpack.c.b16 %v191, %v189
      %v200 = vpack.c.b16 %v192, %v190
      %v201 = vpack.c.b16 %v195, %v193
      %v202 = vpack.c.b16 %v196, %v194
      %v203 = vpack.c.b16 %v197, %v197
      %v204 = vpack.c.b16 %v198, %v198
      %vm209 = vcmask 293888
      %v211 = vsel %vm209, %v172, 0
      %vm213 = vcmask 1041408
      %v215 = vsel %vm213, %v203, 0
      %v218 = vsel %vm213, %v204, 0
      %220 = vmatprep.subr.bf16.mxu0 %v200
      %221 = vmatpush1.bf16.msra.mxu0 %v199
      %222 = vmatprep.subr.bf16.mxu0 %v202
      %223 = vmatpush1.bf16.msra.mxu0 %v201
      %224 = vmatprep.subr.bf16.mxu0 %v218
      %225 = vmatpush1.bf16.msra.mxu0 %v215
      %226 = vmatprep.subr.bf16.mxu0 0
      %227 = vmatpush1.bf16.msra.mxu0 0
      %228 = vmatprep.subr.bf16.mxu0 0
      %229 = vmatpush1.bf16.msra.mxu0 0
      %230 = vmatprep.subr.bf16.mxu0 0
      %231 = vmatpush1.bf16.msra.mxu0 0
      %232 = vmatprep.subr.bf16.mxu0 0
      %233 = vmatpush1.bf16.msra.mxu0 0
      %234 = vmatprep.subr.bf16.mxu0 0
      %235 = vmatpush1.bf16.msra.mxu0 0
      %236 = vmatprep.subr.bf16.mxu0 0
      %237 = vmatpush1.bf16.msra.mxu0 0
      %238 = vmatprep.subr.bf16.mxu0 0
      %239 = vmatpush1.bf16.msra.mxu0 0
      %240 = vmatprep.subr.bf16.mxu0 0
      %241 = vmatpush1.bf16.msra.mxu0 0
      %242 = vmatprep.subr.bf16.mxu0 0
      %243 = vmatpush1.bf16.msra.mxu0 0
      %244 = vmatprep.subr.bf16.mxu0 0
      %245 = vmatpush1.bf16.msra.mxu0 0
      %246 = vmatprep.subr.bf16.mxu0 0
      %247 = vmatpush1.bf16.msra.mxu0 0
      %248 = vmatprep.subr.bf16.mxu0 0
      %249 = vmatpush1.bf16.msra.mxu0 0
      %250 = vmatprep.subr.bf16.mxu0 0
      %251 = vmatpush1.bf16.msra.mxu0 0
      %252 = vmatprep.mubr.bf16.mxu0 0
      %253 = vmatmul.mubr.bf16.gmra.mrb[0].mxu0 %v211
      %v254 = vpop.f32.mrb[0].mxu0
      %v255 = vadd.f32 %v182, %v254
      %v256 = vpop.f32.mrb[0].mxu0
      %v257 = vadd.f32 %v182, %v256
      %v258 = vpop.f32.mrb[0].mxu0
      %v259 = vpop.f32.mrb[0].mxu0
      %260 = vdwg.mxu0
      %v261 = vmax.f32 %v255, 0.0
      %v262 = vmax.f32 %v257, 0.0
      %263 = vst [vmem:[%s170] sm:$0xff] %v261
      %264 = vst [vmem:[%s170 + $0x8] sm:$0xff] %v262
      %p265 = scmp.lt.s32.totalorder %s14, 1
      %s266 = scalar_select %p265, %s14, 1
      %s267 = smul.addr %s266, 2
      %s268 = smul.addr %s267, 8
      %s269 = scalar_lea.vmem %s3, %s268
      // Predicated region
      $region33: #{_dist_conv_forward.1} parent=31 // pred_check
        %p270 = pneg %p100
      $region34: #{_dist_conv_forward.1} parent=31 // pred_check_branch
        %272 = sbr.rel (%p270) target = $region36
      $region35: #{_dist_conv_forward.1} parent=31 // pred_region
        _
      $region36: #{_dist_conv_forward.1} parent=31 // pred_fallthru
        _
    $region32: #{_dist_conv_forward.1} parent=5 // pred_fallthru
      _
    %p273 = scmp.le.s32.totalorder 2, %s9
    // Predicated region
    $region37: #{_dist_conv_forward.1} parent=5 // pred_check
      %p274 = pneg %p273
    $region38: #{_dist_conv_forward.1} parent=5 // pred_check_branch
      %276 = sbr.rel (%p274) target = $region40
    $region39: #{_dist_conv_forward.1} parent=5 // pred_region
      %s277 = ssub.s32 %s9, 2
      // Predicated region
      $region41: #{_dist_conv_forward.1} parent=39 // pred_check
        %p278 = pneg %p106
      $region42: #{_dist_conv_forward.1} parent=39 // pred_check_branch
        %280 = sbr.rel (%p278) target = $region44
      $region43: #{_dist_conv_forward.1} parent=39 // pred_region
        %p281 = scmp.lt.s32.totalorder %s15, 1
        %s282 = scalar_select %p281, %s15, 1
        %s283 = smul.addr %s282, 2
        %s284 = smul.addr %s283, 8
        %s285 = scalar_lea.vmem %s3, %s284
      $region44: #{_dist_conv_forward.1} parent=39 // pred_fallthru
        _
    $region40: #{_dist_conv_forward.1} parent=5 // pred_fallthru
      _
  $region6: #{_dist_conv_forward.1} parent=0 // loop_footer
    %s13 = sadd.s32 1, %s9
  $region7: #{_dist_conv_forward.1} parent=0 // loop_footer_branch
    %8 = sbr.rel target = $region3
  $region8: #{_dist_conv_forward.1} parent=0 // loop_exit
    _

</llo_original>
